<compile_context>
chip_gen: v7x
topology: tpu7x:2x2x1
jax: 0.10.0
libtpu: 0.0.40
codegen_flags: <defaults>
</compile_context>

<pallas_src>
import functools

import jax
import jax.numpy as jnp
from jax.experimental import pallas as pl
from jax.experimental.pallas import tpu as pltpu

IN_FEATURES = 10
OUT_FEATURES = 10


def _linear_sum_kernel(wsum_ref, bsum_ref, x_ref, o_ref, acc_ref):
    # wsum_ref: (1, IN) VMEM   -- column-sum of W (constant over the grid)
    # bsum_ref: (1,)    SMEM   -- B * sum(b)
    # x_ref:    (TB, IN) VMEM  -- current batch tile of x
    # o_ref:    (1, 1)  SMEM   -- scalar output
    # acc_ref:  (1, IN) VMEM scratch -- running per-feature column sum of x
    i = pl.program_id(0)

    @pl.when(i == 0)
    def _():
        acc_ref[...] = jnp.zeros_like(acc_ref)

    # Streaming per-feature reduction over the batch tile (VPU only, f32 accum).
    acc_ref[...] += jnp.sum(x_ref[...].astype(jnp.float32), axis=0, keepdims=True)

    @pl.when(i == pl.num_programs(0) - 1)
    def _():
        # sum(x @ W.T + b) == dot(colsum(x), colsum(W)) + B * sum(b)
        o_ref[0, 0] = jnp.sum(acc_ref[...] * wsum_ref[...]) + bsum_ref[0]


@functools.partial(jax.jit, static_argnames=("block_rows",))
def module_a_forward(x, w, b, *, block_rows=512):
    """x: (B, IN) f32, w: (OUT, IN) f32, b: (OUT,) f32 -> scalar f32."""
    B = x.shape[0]

    # Fold the weight/bias contributions into tiny constants.
    wsum = jnp.sum(w.astype(jnp.float32), axis=0).reshape(1, IN_FEATURES)
    bsum = (jnp.float32(B) * jnp.sum(b.astype(jnp.float32))).reshape(1)

    # Batch tile: one full block for small B, otherwise a large 8-aligned tile.
    # Zero-padded rows do not affect the column sum; the bias term uses the
    # true B, so the result is exact.
    if B <= block_rows:
        tb = B
        xp = x
    else:
        tb = block_rows
        pad = (-B) % tb
        xp = jnp.pad(x, ((0, pad), (0, 0))) if pad else x
    num_tiles = xp.shape[0] // tb

    out = pl.pallas_call(
        _linear_sum_kernel,
        out_shape=jax.ShapeDtypeStruct((1, 1), jnp.float32),
        grid=(num_tiles,),
        in_specs=[
            pl.BlockSpec((1, IN_FEATURES), lambda i: (0, 0)),        # colsum(W)
            pl.BlockSpec(memory_space=pltpu.MemorySpace.SMEM),       # B * sum(b)
            pl.BlockSpec((tb, IN_FEATURES), lambda i: (i, 0)),       # x batch tile
        ],
        out_specs=pl.BlockSpec(memory_space=pltpu.MemorySpace.SMEM),
        scratch_shapes=[pltpu.VMEM((1, IN_FEATURES), jnp.float32)],
        compiler_params=pltpu.CompilerParams(
            dimension_semantics=("arbitrary",),  # reduction (accumulator) axis
        ),
    )(wsum, bsum, xp)
    # TODO(synk): on v7x the batch axis could be split into 2 "parallel"
    # partial column-sums (one per TensorCore) and combined in the wrapper.
    return out[0, 0]


def init_params(key):
    # Deterministic init mimicking PyTorch Linear default: U(-1/sqrt(in), 1/sqrt(in))
    kw, kb = jax.random.split(key)
    bound = 1.0 / (IN_FEATURES ** 0.5)
    w = jax.random.uniform(kw, (OUT_FEATURES, IN_FEATURES), jnp.float32, -bound, bound)
    b = jax.random.uniform(kb, (OUT_FEATURES,), jnp.float32, -bound, bound)
    return w, b


if __name__ == "__main__":
    key = jax.random.PRNGKey(0)
    k_x, k_p, k_x2 = jax.random.split(key, 3)
    w, b = init_params(k_p)

    # Primary small-shape check (matches the module spec: Linear(10, 10)).
    batch = 2
    x = jax.random.normal(k_x, (batch, IN_FEATURES), jnp.float32)
    out = module_a_forward(x, w, b)
    jax.block_until_ready(out)
    ref = jnp.sum(x @ w.T + b)
    assert jnp.allclose(out, ref, rtol=1e-5, atol=1e-5), (out, ref)

    # Secondary check exercising the multi-tile grid / accumulator path.
    x2 = jax.random.normal(k_x2, (48, IN_FEATURES), jnp.float32)
    out2 = module_a_forward(x2, w, b, block_rows=16)
    jax.block_until_ready(out2)
    ref2 = jnp.sum(x2 @ w.T + b)
    assert jnp.allclose(out2, ref2, rtol=1e-5, atol=1e-5), (out2, ref2)

    print("KERNEL_OK")
</pallas_src>

<mosaic_0001>
module attributes {stable_mosaic.version = 11 : i64} {
  func.func @_linear_sum_kernel(%arg0: i32, %arg1: memref<1x10xf32, #tpu.memory_space<vmem>>, %arg2: memref<1xf32, #tpu.memory_space<smem>>, %arg3: memref<2x10xf32, #tpu.memory_space<vmem>>, %arg4: memref<1x1xf32, #tpu.memory_space<smem>>, %arg5: memref<1x10xf32, #tpu.memory_space<vmem>>) attributes {dimension_semantics = [#tpu.dimension_semantics<arbitrary>], iteration_bounds = array<i64: 1>, scalar_prefetch = 0 : i64, scratch_operands = 1 : i64, tpu.core_type = #tpu.core_type<tc>, window_params = [{pipeline_mode = #tpu.pipeline_mode<synchronous>, transform_indices = @transform_0, window_bounds = array<i64: 1, 10>}, {transform_indices = @transform_1, window_bounds = array<i64: 1>}, {transform_indices = @transform_2, window_bounds = array<i64: 2, 10>}, {transform_indices = @transform_3, window_bounds = array<i64: 1, 1>}]} {
    %c0_i32 = arith.constant 0 : i32
    %0 = arith.cmpi eq, %arg0, %c0_i32 : i32
    %1 = arith.extui %0 : i1 to i32
    %c0_i32_0 = arith.constant 0 : i32
    %2 = arith.cmpi ne, %1, %c0_i32_0 : i32
    scf.if %2 {
      %cst_8 = arith.constant 0.000000e+00 : f32
      %12 = vector.broadcast %cst_8 : f32 to vector<1x10xf32>
      %c0_9 = arith.constant 0 : index
      %c0_10 = arith.constant 0 : index
      %13 = vector.load %arg5[%c0_9, %c0_10] : memref<1x10xf32, #tpu.memory_space<vmem>>, vector<1x10xf32>
      tpu.vector_store %arg5[%c0_9, %c0_10], %12 {strides = array<i32>} : memref<1x10xf32, #tpu.memory_space<vmem>>, vector<1x10xf32>,
    } else {
    }
    %c0 = arith.constant 0 : index
    %c0_1 = arith.constant 0 : index
    %3 = vector.load %arg5[%c0, %c0_1] : memref<1x10xf32, #tpu.memory_space<vmem>>, vector<1x10xf32>
    %c0_2 = arith.constant 0 : index
    %c0_3 = arith.constant 0 : index
    %4 = vector.load %arg3[%c0_2, %c0_3] : memref<2x10xf32, #tpu.memory_space<vmem>>, vector<2x10xf32>
    %cst = arith.constant dense<0.000000e+00> : vector<10xf32>
    %5 = vector.multi_reduction <add>, %4, %cst [0] : vector<2x10xf32> to vector<10xf32>
    %6 = vector.shape_cast %5 : vector<10xf32> to vector<1x10xf32>
    %7 = arith.addf %3, %6 : vector<1x10xf32>
    %c0_4 = arith.constant 0 : index
    %c0_5 = arith.constant 0 : index
    %8 = vector.load %arg5[%c0_4, %c0_5] : memref<1x10xf32, #tpu.memory_space<vmem>>, vector<1x10xf32>
    tpu.vector_store %arg5[%c0_4, %c0_5], %7 {strides = array<i32>} : memref<1x10xf32, #tpu.memory_space<vmem>>, vector<1x10xf32>,
    %c0_i32_6 = arith.constant 0 : i32
    %9 = arith.cmpi eq, %arg0, %c0_i32_6 : i32
    %10 = arith.extui %9 : i1 to i32
    %c0_i32_7 = arith.constant 0 : i32
    %11 = arith.cmpi ne, %10, %c0_i32_7 : i32
    scf.if %11 {
      %c0_8 = arith.constant 0 : index
      %c0_9 = arith.constant 0 : index
      %12 = vector.load %arg5[%c0_8, %c0_9] : memref<1x10xf32, #tpu.memory_space<vmem>>, vector<1x10xf32>
      %c0_10 = arith.constant 0 : index
      %c0_11 = arith.constant 0 : index
      %13 = vector.load %arg1[%c0_10, %c0_11] : memref<1x10xf32, #tpu.memory_space<vmem>>, vector<1x10xf32>
      %14 = arith.mulf %12, %13 : vector<1x10xf32>
      %15 = vector.shape_cast %14 : vector<1x10xf32> to vector<1x1x10xf32>
      %cst_12 = arith.constant dense<0.000000e+00> : vector<1xf32>
      %16 = vector.multi_reduction <add>, %15, %cst_12 [1, 2] : vector<1x1x10xf32> to vector<1xf32>
      %17 = vector.shape_cast %16 : vector<1xf32> to vector<1x1x1xf32>
      %18 = vector.extract %17[0, 0, 0] : f32 from vector<1x1x1xf32>
      %c0_13 = arith.constant 0 : index
      %19 = memref.load %arg2[%c0_13] : memref<1xf32, #tpu.memory_space<smem>>
      %20 = arith.addf %18, %19 : f32
      %c0_14 = arith.constant 0 : index
      %c0_15 = arith.constant 0 : index
      %21 = memref.load %arg4[%c0_14, %c0_15] : memref<1x1xf32, #tpu.memory_space<smem>>
      memref.store %20, %arg4[%c0_14, %c0_15] : memref<1x1xf32, #tpu.memory_space<smem>>
    } else {
    }
    return
  }
  func.func @transform_0(%arg0: i32) -> (i32, i32) {
    %c0_i32 = arith.constant 0 : i32
    %c0_i32_0 = arith.constant 0 : i32
    %c0_i32_1 = arith.constant 0 : i32
    return %c0_i32, %c0_i32_0 : i32, i32
  }
  func.func @transform_1(%arg0: i32) -> i32 {
    %c0_i32 = arith.constant 0 : i32
    %c0_i32_0 = arith.constant 0 : i32
    return %c0_i32 : i32
  }
  func.func @transform_2(%arg0: i32) -> (i32, i32) {
    %c0_i32 = arith.constant 0 : i32
    %c0_i32_0 = arith.constant 0 : i32
    return %arg0, %c0_i32 : i32, i32
  }
  func.func @transform_3(%arg0: i32) -> (i32, i32) {
    %c0_i32 = arith.constant 0 : i32
    %c0_i32_0 = arith.constant 0 : i32
    %c0_i32_1 = arith.constant 0 : i32
    return %c0_i32, %c0_i32_0 : i32, i32
  }
}

</mosaic_0001>

<llo_original>
// kernel: module_a_forward.1
$region0: #{module_a_forward.1}
  #allocation0 [shape = 'u32[]', space=smem, size = 0x4, offset = 0x4, fixed_abs, tag = 'smem constant byte address 0x4 - core index']
  #allocation1 [shape = 'u32[144,128]{1,0:T(1,128)}', space=vmem, size = 0x12000, scoped, tag = 'internal scratch']
  #allocation2 [shape = 'f32[1,10]{1,0:T(1,128)}', space=vmem, size = 0x200, scoped, tag = 'scratch operand']
  #allocation3 [shape = 'f32[1]{0:T(128)S(6)}', space=smem, size = 0x200, scoped, tag = 'scoped memory for module_a_forward.1']
  %s0 = inlined_call_operand.vmem [shape: f32[1,10], index: 0, kind: input, shape index: {}]
  %s1 = inlined_call_operand.<no memory space> [shape: f32[1], index: 1, kind: input, shape index: {}]
  %s2 = inlined_call_operand.vmem [shape: f32[2,10], index: 2, kind: input, shape index: {}]
  %s3 = inlined_call_operand.hbm [shape: f32[1,1], index: 3, kind: output, shape index: {}]
  %s4 = sld [smem:[#allocation0]]
  $region30: #{module_a_forward.1} parent=0
    _
  %s6 = ssub.s32 1, %s4
  %s7 = scalar_select 0, %s6, %s4
  %8 = sst [smem:[#allocation3]] %s1
  $region1: #{module_a_forward.1} parent=0
    #allocation4 [shape = 'u8[512]{0}', space=smem, size = 0x200, scoped, tag = 'output window, operand 0, single buffered']
    #allocation5 [shape = 's32[1]{0}', space=sflag, size = 0x4, scoped, tag = 'scoped memory for module_a_forward.1']
    %9 = vsyncpa [#allocation5], 0
    // Predicated region
    $region2: #{module_a_forward.1} parent=1 // pred_check
      _
    $region3: #{module_a_forward.1} parent=1 // pred_check_branch
      %11 = sbr.rel (0) target = $region5
    $region4: #{module_a_forward.1} parent=1 // pred_region
      _
    $region5: #{module_a_forward.1} parent=1 // pred_fallthru
      _
    // Predicated region
    $region6: #{module_a_forward.1} parent=1 // pred_check
      _
    $region7: #{module_a_forward.1} parent=1 // pred_check_branch
      %13 = sbr.rel (0) target = $region9
    $region8: #{module_a_forward.1} parent=1 // pred_region
      _
    $region9: #{module_a_forward.1} parent=1 // pred_fallthru
      _
    // Predicated region
    $region10: #{module_a_forward.1} parent=1 // pred_check
      _
    $region11: #{module_a_forward.1} parent=1 // pred_check_branch
      %15 = sbr.rel (0) target = $region13
    $region12: #{module_a_forward.1} parent=1 // pred_region
      _
    $region13: #{module_a_forward.1} parent=1 // pred_fallthru
      _
    %p16 = scmp.eq.s32.totalorder 0, 0
    // Predicated region
    $region14: #{module_a_forward.1} parent=1 // pred_check
      %p17 = pneg %p16
    $region15: #{module_a_forward.1} parent=1 // pred_check_branch
      %19 = sbr.rel (%p17) target = $region17
    $region16: #{module_a_forward.1} parent=1 // pred_region
      %vm20 = vcmask 73728
      %21 = vst.msk [vmem:[#allocation2] sm:$0x1] %vm20, 0.0
    $region17: #{module_a_forward.1} parent=1 // pred_fallthru
      _
    %v22 = vld [vmem:[#allocation2] sm:$0x1]
    %v23 = vld [vmem:[%s2] sm:$0x3]
    %vm24 = vcmask 74752
    %v25 = vsel %vm24, %v23, 0.0
    %v26 = vrot.slane %v25, 4
    %v27 = vadd.f32 %v25, %v26
    %v28 = vrot.slane %v27, 2
    %v29 = vadd.f32 %v27, %v28
    %v30 = vrot.slane %v29, 1
    %v31 = vadd.f32 %v29, %v30
    %v32 = vadd.f32 %v22, %v31
    %vm33 = vcmask 73728
    %34 = vst.msk [vmem:[#allocation2] sm:$0x1] %vm33, %v32
    // Predicated region
    $region18: #{module_a_forward.1} parent=1 // pred_check
      %p35 = pneg %p16
    $region19: #{module_a_forward.1} parent=1 // pred_check_branch
      %37 = sbr.rel (%p35) target = $region21
    $region20: #{module_a_forward.1} parent=1 // pred_region
      %v38 = vld [vmem:[#allocation2] sm:$0x1]
      %v39 = vld [vmem:[%s0] sm:$0x1]
      %v40 = vmul.f32 %v38, %v39
      %v41 = vsel %vm33, %v40, 0.0
      %42 = vadd.xlane.f32.xlu0 %v41
      %v43 = vpop.xlane.xlu0 %42
      %v44 = vrot.slane %v43, 4
      %v45 = vadd.f32 %v43, %v44
      %v46 = vrot.slane %v45, 2
      %v47 = vadd.f32 %v45, %v46
      %v48 = vrot.slane %v47, 1
      %v49 = vadd.f32 %v47, %v48
      %s50 = vtos %v49
      %s51 = sld [smem:[#allocation3]]
      %s52 = sadd.f32 %s50, %s51
      %s53 = scalar_lea.smem [#allocation4], 0
      %54 = sst [smem:[%s53]] %s52
    $region21: #{module_a_forward.1} parent=1 // pred_fallthru
      _
    // Predicated region
    $region22: #{module_a_forward.1} parent=1 // pred_check
      _
    $region23: #{module_a_forward.1} parent=1 // pred_check_branch
      %56 = sbr.rel (0) target = $region25
    $region24: #{module_a_forward.1} parent=1 // pred_region
      %s58 = ssub.s32 16, 16
      %59 = vsyncadd [#allocation5], %s58
      %62 = dma.smem_to_hbm [#allocation4], 16, %s3, [#allocation5]
    $region25: #{module_a_forward.1} parent=1 // pred_fallthru
      _
    // Predicated region
    $region26: #{module_a_forward.1} parent=1 // pred_check
      _
    $region27: #{module_a_forward.1} parent=1 // pred_check_branch
      %64 = sbr.rel (0) target = $region29
    $region28: #{module_a_forward.1} parent=1 // pred_region
      %65 = dma.done [#allocation5], 16
    $region29: #{module_a_forward.1} parent=1 // pred_fallthru
      _
    %66 = sfence
    %67 = vsyncpa [#allocation5], 1

</llo_original>
